<compile_context>
chip_gen: v7x
topology: tpu7x:2x2x1
jax: 0.10.0
libtpu: 0.0.40
codegen_flags: <defaults>
</compile_context>

<pallas_src>
import functools

import jax
import jax.numpy as jnp
from jax.experimental import pallas as pl
from jax.experimental.pallas import tpu as pltpu

EPS = 1e-5


def _round_up(x, m):
    return (x + m - 1) // m * m


def start_block_kernel(p1_ref, w1t_ref, g1_ref, b1_ref, w2t_ref, g2_ref,
                       b2_ref, mask1_ref, mask2_ref, o_ref, *,
                       m1_count, m2_count, tap_offsets):
    """Fused conv1+BN1+ReLU+conv2+BN2+ReLU, everything channel-major.

    p1_ref   : (9*cin, M_in)  im2col of x (columns m = n*H1*W1 + i*W1 + j,
               zero-padded beyond the m1_count real columns)
    w1t_ref  : (c1, 9*cin)    conv1 weights, channel-major
    w2t_ref  : (c2, 9*c1)     conv2 weights, channel-major
    g*/b*    : (c, 1)         BN affine params
    mask1_ref: (1, M_in)      1.0 on real conv1 columns
    mask2_ref: (1, M_out)     1.0 on valid conv2 output columns
    o_ref    : (c2, M_out)    channel-major output slab (M_out % 128 == 0)
    """
    m_out = o_ref.shape[1]

    # ---- conv1: one channel-major matmul on the MXU ----------------------
    y1 = jnp.dot(w1t_ref[...], p1_ref[...],
                 preferred_element_type=jnp.float32)           # (c1, M_in)

    # ---- BN1: two-pass (centered) batch stats + affine + ReLU ------------
    mask1 = mask1_ref[...]                                     # (1, M_in)
    inv_m1 = 1.0 / float(m1_count)
    mean1 = jnp.sum(y1 * mask1, axis=1, keepdims=True) * inv_m1
    d1 = (y1 - mean1) * mask1
    var1 = jnp.sum(d1 * d1, axis=1, keepdims=True) * inv_m1
    scale1 = g1_ref[...] * jax.lax.rsqrt(var1 + EPS)           # (c1, 1)
    shift1 = b1_ref[...] - mean1 * scale1
    y1 = jnp.maximum(y1 * scale1 + shift1, 0.0)                # (c1, M_in)

    # ---- conv2: p2 built in (9*c1, M_out) layout (sublane-stacked taps) ---
    # Tap (kh,kw) of a VALID output column m is y1 column m + kh*W1 + kw, so a
    # static lane shift of y1 gives the whole tap; out-of-range columns are
    # garbage but masked out of BN2 stats and sliced away in the wrapper.
    taps = [y1[:, off:off + m_out] for off in tap_offsets]     # 9 x (c1, M_out)
    p2 = jnp.concatenate(taps, axis=0)                         # (9*c1, M_out)
    y2 = jnp.dot(w2t_ref[...], p2,
                 preferred_element_type=jnp.float32)           # (c2, M_out)

    # ---- BN2 + ReLU on the lane-dense (c2, M_out) layout ------------------
    mask2 = mask2_ref[...]                                     # (1, M_out)
    inv_m2 = 1.0 / float(m2_count)
    mean2 = jnp.sum(y2 * mask2, axis=1, keepdims=True) * inv_m2
    d2 = (y2 - mean2) * mask2
    var2 = jnp.sum(d2 * d2, axis=1, keepdims=True) * inv_m2
    scale2 = g2_ref[...] * jax.lax.rsqrt(var2 + EPS)           # (c2, 1)
    shift2 = b2_ref[...] - mean2 * scale2
    o_ref[...] = jnp.maximum(y2 * scale2 + shift2, 0.0).astype(o_ref.dtype)


def start_block(x_nchw, w1_hwio, g1, b1, w2_hwio, g2, b2):
    """Wrapper: hoists conv1's im2col (and all layout plumbing) into XLA,
    runs the fused channel-major kernel on a 128-aligned output slab, then
    slices/reshapes back to NCHW outside the kernel."""
    n, cin, h, w = x_nchw.shape
    c1 = w1_hwio.shape[-1]
    c2 = w2_hwio.shape[-1]
    h1, w1_ = h - 2, w - 2           # conv1 output spatial dims
    h2, w2_ = h - 4, w - 4           # conv2 output spatial dims
    m1 = n * h1 * w1_                # real conv1 columns
    m2 = n * h2 * w2_                # valid conv2 columns
    max_off = 2 * w1_ + 2            # largest conv2 tap shift
    m_out = _round_up(m1, 128)       # lane-dense, 128-aligned output width
    m_in = _round_up(m_out + max_off, 128)   # conv1/BN1 working width

    # NCHW -> NHWC (pure reshape when cin == 1).
    if cin == 1:
        x = x_nchw.reshape(n, h, w, 1).astype(jnp.float32)
    else:
        x = jnp.transpose(x_nchw, (0, 2, 3, 1)).astype(jnp.float32)

    # conv1 im2col hoisted to XLA, emitted directly in (9*cin, M) layout with
    # rows ordered (kh, kw, ci) to match the HWIO weight reshape below.
    taps1 = [x[:, kh:kh + h1, kw:kw + w1_, :]
             for kh in range(3) for kw in range(3)]            # 9 x (N,H1,W1,cin)
    p1 = jnp.stack(taps1, axis=0)                              # (9,N,H1,W1,cin)
    p1t = jnp.moveaxis(p1, -1, 1).reshape(9 * cin, m1)         # (9*cin, m1)
    p1t = jnp.pad(p1t, ((0, 0), (0, m_in - m1)))               # zero-pad lanes

    # Channel-major weights: (Cout, 9*Cin).
    w1t = w1_hwio.reshape(9 * cin, c1).T.astype(jnp.float32)   # (c1, 9*cin)
    w2t = w2_hwio.reshape(9 * c1, c2).T.astype(jnp.float32)    # (c2, 9*c1)

    # Masks: real conv1 columns, and valid conv2 output columns (i<h2, j<w2).
    col1 = jnp.arange(m_in)
    mask1 = (col1 < m1).astype(jnp.float32)[None, :]           # (1, m_in)
    col2 = jnp.arange(m_out)
    rem = col2 % (h1 * w1_)
    mask2 = ((col2 < m1) & (rem // w1_ < h2) & (rem % w1_ < w2_))
    mask2 = mask2.astype(jnp.float32)[None, :]                 # (1, m_out)

    tap_offsets = tuple(kh * w1_ + kw for kh in range(3) for kw in range(3))

    flops = (2 * c1 * 9 * cin * m_in + 2 * c2 * 9 * c1 * m_out
             + 10 * (c1 * m_in + c2 * m_out))
    bytes_accessed = 4 * (p1t.size + w1t.size + w2t.size + mask1.size
                          + mask2.size + 2 * (c1 + c2) + c2 * m_out)

    vmem = pl.BlockSpec(memory_space=pltpu.MemorySpace.VMEM)
    kernel = functools.partial(start_block_kernel, m1_count=m1, m2_count=m2,
                               tap_offsets=tap_offsets)
    out_cm = pl.pallas_call(
        kernel,
        out_shape=jax.ShapeDtypeStruct((c2, m_out), jnp.float32),
        in_specs=[vmem] * 9,
        out_specs=vmem,
        cost_estimate=pl.CostEstimate(flops=flops,
                                      transcendentals=c1 + c2,
                                      bytes_accessed=bytes_accessed),
    )(p1t, w1t,
      g1.reshape(c1, 1).astype(jnp.float32), b1.reshape(c1, 1).astype(jnp.float32),
      w2t,
      g2.reshape(c2, 1).astype(jnp.float32), b2.reshape(c2, 1).astype(jnp.float32),
      mask1, mask2)

    # (c2, m_out) -> valid grid -> (N, c2, H2, W2)   (all outside the kernel)
    out = out_cm[:, :m1].reshape(c2, n, h1, w1_)[:, :, :h2, :w2_]
    return jnp.transpose(out, (1, 0, 2, 3))


def ref_start_block(x_nchw, w1_hwio, g1, b1, w2_hwio, g2, b2):
    """Pure-JAX reference (lax conv) for correctness checking."""
    x = jnp.transpose(x_nchw, (0, 2, 3, 1)).astype(jnp.float32)

    def block(y, w, g, b):
        dn = jax.lax.conv_dimension_numbers(y.shape, w.shape,
                                            ('NHWC', 'HWIO', 'NHWC'))
        y = jax.lax.conv_general_dilated(y, w, (1, 1), 'VALID',
                                         dimension_numbers=dn)
        mean = y.mean(axis=(0, 1, 2))
        var = ((y - mean) ** 2).mean(axis=(0, 1, 2))
        y = (y - mean) / jnp.sqrt(var + EPS) * g + b
        return jnp.maximum(y, 0.0)

    y = block(x, w1_hwio, g1, b1)
    y = block(y, w2_hwio, g2, b2)
    return jnp.transpose(y, (0, 3, 1, 2))


if __name__ == "__main__":
    key = jax.random.PRNGKey(0)
    k_x, k_w1, k_w2, k_g1, k_b1, k_g2, k_b2 = jax.random.split(key, 7)

    in_planes, out_planes = 1, 8
    N, H, W = 2, 16, 16

    # Input (PyTorch NCHW convention).
    x = jax.random.normal(k_x, (N, in_planes, H, W), jnp.float32)

    # Deterministic parameter init (shapes follow the module's __init__).
    # Conv weights kept in HWIO; PyTorch OIHW (8,1,3,3) <-> HWIO (3,3,1,8).
    w1 = 0.2 * jax.random.normal(k_w1, (3, 3, in_planes, out_planes), jnp.float32)
    w2 = 0.2 * jax.random.normal(k_w2, (3, 3, out_planes, out_planes), jnp.float32)
    g1 = 1.0 + 0.1 * jax.random.normal(k_g1, (out_planes,), jnp.float32)
    b1 = 0.1 * jax.random.normal(k_b1, (out_planes,), jnp.float32)
    g2 = 1.0 + 0.1 * jax.random.normal(k_g2, (out_planes,), jnp.float32)
    b2 = 0.1 * jax.random.normal(k_b2, (out_planes,), jnp.float32)

    out = start_block(x, w1, g1, b1, w2, g2, b2)
    out = jax.block_until_ready(out)

    ref = jax.block_until_ready(ref_start_block(x, w1, g1, b1, w2, g2, b2))

    assert out.shape == (N, out_planes, H - 4, W - 4), out.shape
    assert jnp.allclose(out, ref, atol=1e-4, rtol=1e-4), (
        float(jnp.max(jnp.abs(out - ref))))

    # TODO(synk): running-mean/var buffer updates of BatchNorm (training side
    # effect) are not modeled; they do not affect the forward output.
    print("KERNEL_OK")
</pallas_src>

<mosaic_0001>
module attributes {stable_mosaic.version = 11 : i64} {
  func.func @start_block_kernel(%arg0: memref<9x640xf32, #tpu.memory_space<vmem>>, %arg1: memref<8x9xf32, #tpu.memory_space<vmem>>, %arg2: memref<8x1xf32, #tpu.memory_space<vmem>>, %arg3: memref<8x1xf32, #tpu.memory_space<vmem>>, %arg4: memref<8x72xf32, #tpu.memory_space<vmem>>, %arg5: memref<8x1xf32, #tpu.memory_space<vmem>>, %arg6: memref<8x1xf32, #tpu.memory_space<vmem>>, %arg7: memref<1x640xf32, #tpu.memory_space<vmem>>, %arg8: memref<1x512xf32, #tpu.memory_space<vmem>>, %arg9: memref<8x512xf32, #tpu.memory_space<vmem>>) attributes {dimension_semantics = [], scalar_prefetch = 0 : i64, scratch_operands = 0 : i64, tpu.core_type = #tpu.core_type<tc>} {
    %c0 = arith.constant 0 : index
    %c0_0 = arith.constant 0 : index
    %0 = vector.load %arg1[%c0, %c0_0] : memref<8x9xf32, #tpu.memory_space<vmem>>, vector<8x9xf32>
    %c0_1 = arith.constant 0 : index
    %c0_2 = arith.constant 0 : index
    %1 = vector.load %arg0[%c0_1, %c0_2] : memref<9x640xf32, #tpu.memory_space<vmem>>, vector<9x640xf32>
    %cst = arith.constant dense<0.000000e+00> : vector<8x640xf32>
    %2 = tpu.matmul %0, %1, %cst {dimension_numbers = #tpu.dot_dimension_numbers<[1], [0], [0], [1], [0, 0, 1, 1], [], []>} : vector<8x9xf32>, vector<9x640xf32>, vector<8x640xf32> -> vector<8x640xf32>
    %c0_3 = arith.constant 0 : index
    %c0_4 = arith.constant 0 : index
    %3 = vector.load %arg7[%c0_3, %c0_4] : memref<1x640xf32, #tpu.memory_space<vmem>>, vector<1x640xf32>
    %4 = vector.broadcast %3 : vector<1x640xf32> to vector<8x640xf32>
    %5 = arith.mulf %2, %4 : vector<8x640xf32>
    %cst_5 = arith.constant dense<0.000000e+00> : vector<8xf32>
    %6 = vector.multi_reduction <add>, %5, %cst_5 [1] : vector<8x640xf32> to vector<8xf32>
    %7 = vector.shape_cast %6 : vector<8xf32> to vector<8x1xf32>
    %cst_6 = arith.constant 0.00255102036 : f32
    %8 = vector.broadcast %cst_6 : f32 to vector<8x1xf32>
    %9 = arith.mulf %7, %8 : vector<8x1xf32>
    %10 = vector.broadcast %9 : vector<8x1xf32> to vector<8x640xf32>
    %11 = arith.subf %2, %10 : vector<8x640xf32>
    %12 = vector.broadcast %3 : vector<1x640xf32> to vector<8x640xf32>
    %13 = arith.mulf %11, %12 : vector<8x640xf32>
    %14 = arith.mulf %13, %13 : vector<8x640xf32>
    %cst_7 = arith.constant dense<0.000000e+00> : vector<8xf32>
    %15 = vector.multi_reduction <add>, %14, %cst_7 [1] : vector<8x640xf32> to vector<8xf32>
    %16 = vector.shape_cast %15 : vector<8xf32> to vector<8x1xf32>
    %cst_8 = arith.constant 0.00255102036 : f32
    %17 = vector.broadcast %cst_8 : f32 to vector<8x1xf32>
    %18 = arith.mulf %16, %17 : vector<8x1xf32>
    %c0_9 = arith.constant 0 : index
    %c0_10 = arith.constant 0 : index
    %19 = vector.load %arg2[%c0_9, %c0_10] : memref<8x1xf32, #tpu.memory_space<vmem>>, vector<8x1xf32>
    %cst_11 = arith.constant 9.99999974E-6 : f32
    %20 = vector.broadcast %cst_11 : f32 to vector<8x1xf32>
    %21 = arith.addf %18, %20 : vector<8x1xf32>
    %22 = math.rsqrt %21 : vector<8x1xf32>
    %23 = arith.mulf %19, %22 : vector<8x1xf32>
    %c0_12 = arith.constant 0 : index
    %c0_13 = arith.constant 0 : index
    %24 = vector.load %arg3[%c0_12, %c0_13] : memref<8x1xf32, #tpu.memory_space<vmem>>, vector<8x1xf32>
    %25 = arith.mulf %9, %23 : vector<8x1xf32>
    %26 = arith.subf %24, %25 : vector<8x1xf32>
    %27 = vector.broadcast %23 : vector<8x1xf32> to vector<8x640xf32>
    %28 = arith.mulf %2, %27 : vector<8x640xf32>
    %29 = vector.broadcast %26 : vector<8x1xf32> to vector<8x640xf32>
    %30 = arith.addf %28, %29 : vector<8x640xf32>
    %cst_14 = arith.constant 0.000000e+00 : f32
    %31 = vector.broadcast %cst_14 : f32 to vector<8x640xf32>
    %32 = arith.maximumf %30, %31 : vector<8x640xf32>
    %33 = vector.extract_strided_slice %32 {offsets = [0, 0], sizes = [8, 512], strides = [1, 1]} : vector<8x640xf32> to vector<8x512xf32>
    %34 = vector.extract_strided_slice %32 {offsets = [0, 1], sizes = [8, 512], strides = [1, 1]} : vector<8x640xf32> to vector<8x512xf32>
    %35 = vector.extract_strided_slice %32 {offsets = [0, 2], sizes = [8, 512], strides = [1, 1]} : vector<8x640xf32> to vector<8x512xf32>
    %36 = vector.extract_strided_slice %32 {offsets = [0, 14], sizes = [8, 512], strides = [1, 1]} : vector<8x640xf32> to vector<8x512xf32>
    %37 = vector.extract_strided_slice %32 {offsets = [0, 15], sizes = [8, 512], strides = [1, 1]} : vector<8x640xf32> to vector<8x512xf32>
    %38 = vector.extract_strided_slice %32 {offsets = [0, 16], sizes = [8, 512], strides = [1, 1]} : vector<8x640xf32> to vector<8x512xf32>
    %39 = vector.extract_strided_slice %32 {offsets = [0, 28], sizes = [8, 512], strides = [1, 1]} : vector<8x640xf32> to vector<8x512xf32>
    %40 = vector.extract_strided_slice %32 {offsets = [0, 29], sizes = [8, 512], strides = [1, 1]} : vector<8x640xf32> to vector<8x512xf32>
    %41 = vector.extract_strided_slice %32 {offsets = [0, 30], sizes = [8, 512], strides = [1, 1]} : vector<8x640xf32> to vector<8x512xf32>
    %42 = tpu.concatenate %33, %34, %35, %36, %37, %38, %39, %40, %41 in 0 : vector<8x512xf32>, vector<8x512xf32>, vector<8x512xf32>, vector<8x512xf32>, vector<8x512xf32>, vector<8x512xf32>, vector<8x512xf32>, vector<8x512xf32>, vector<8x512xf32> -> vector<72x512xf32>
    %c0_15 = arith.constant 0 : index
    %c0_16 = arith.constant 0 : index
    %43 = vector.load %arg4[%c0_15, %c0_16] : memref<8x72xf32, #tpu.memory_space<vmem>>, vector<8x72xf32>
    %cst_17 = arith.constant dense<0.000000e+00> : vector<8x512xf32>
    %44 = tpu.matmul %43, %42, %cst_17 {dimension_numbers = #tpu.dot_dimension_numbers<[1], [0], [0], [1], [0, 0, 1, 1], [], []>} : vector<8x72xf32>, vector<72x512xf32>, vector<8x512xf32> -> vector<8x512xf32>
    %c0_18 = arith.constant 0 : index
    %c0_19 = arith.constant 0 : index
    %45 = vector.load %arg8[%c0_18, %c0_19] : memref<1x512xf32, #tpu.memory_space<vmem>>, vector<1x512xf32>
    %46 = vector.broadcast %45 : vector<1x512xf32> to vector<8x512xf32>
    %47 = arith.mulf %44, %46 : vector<8x512xf32>
    %cst_20 = arith.constant dense<0.000000e+00> : vector<8xf32>
    %48 = vector.multi_reduction <add>, %47, %cst_20 [1] : vector<8x512xf32> to vector<8xf32>
    %49 = vector.shape_cast %48 : vector<8xf32> to vector<8x1xf32>
    %cst_21 = arith.constant 0.00347222225 : f32
    %50 = vector.broadcast %cst_21 : f32 to vector<8x1xf32>
    %51 = arith.mulf %49, %50 : vector<8x1xf32>
    %52 = vector.broadcast %51 : vector<8x1xf32> to vector<8x512xf32>
    %53 = arith.subf %44, %52 : vector<8x512xf32>
    %54 = vector.broadcast %45 : vector<1x512xf32> to vector<8x512xf32>
    %55 = arith.mulf %53, %54 : vector<8x512xf32>
    %56 = arith.mulf %55, %55 : vector<8x512xf32>
    %cst_22 = arith.constant dense<0.000000e+00> : vector<8xf32>
    %57 = vector.multi_reduction <add>, %56, %cst_22 [1] : vector<8x512xf32> to vector<8xf32>
    %58 = vector.shape_cast %57 : vector<8xf32> to vector<8x1xf32>
    %cst_23 = arith.constant 0.00347222225 : f32
    %59 = vector.broadcast %cst_23 : f32 to vector<8x1xf32>
    %60 = arith.mulf %58, %59 : vector<8x1xf32>
    %c0_24 = arith.constant 0 : index
    %c0_25 = arith.constant 0 : index
    %61 = vector.load %arg5[%c0_24, %c0_25] : memref<8x1xf32, #tpu.memory_space<vmem>>, vector<8x1xf32>
    %cst_26 = arith.constant 9.99999974E-6 : f32
    %62 = vector.broadcast %cst_26 : f32 to vector<8x1xf32>
    %63 = arith.addf %60, %62 : vector<8x1xf32>
    %64 = math.rsqrt %63 : vector<8x1xf32>
    %65 = arith.mulf %61, %64 : vector<8x1xf32>
    %c0_27 = arith.constant 0 : index
    %c0_28 = arith.constant 0 : index
    %66 = vector.load %arg6[%c0_27, %c0_28] : memref<8x1xf32, #tpu.memory_space<vmem>>, vector<8x1xf32>
    %67 = arith.mulf %51, %65 : vector<8x1xf32>
    %68 = arith.subf %66, %67 : vector<8x1xf32>
    %69 = vector.broadcast %65 : vector<8x1xf32> to vector<8x512xf32>
    %70 = arith.mulf %44, %69 : vector<8x512xf32>
    %71 = vector.broadcast %68 : vector<8x1xf32> to vector<8x512xf32>
    %72 = arith.addf %70, %71 : vector<8x512xf32>
    %cst_29 = arith.constant 0.000000e+00 : f32
    %73 = vector.broadcast %cst_29 : f32 to vector<8x512xf32>
    %74 = arith.maximumf %72, %73 : vector<8x512xf32>
    %c0_30 = arith.constant 0 : index
    %c0_31 = arith.constant 0 : index
    %75 = vector.load %arg9[%c0_30, %c0_31] : memref<8x512xf32, #tpu.memory_space<vmem>>, vector<8x512xf32>
    tpu.vector_store %arg9[%c0_30, %c0_31], %74 {strides = array<i32>} : memref<8x512xf32, #tpu.memory_space<vmem>>, vector<8x512xf32>,
    return
  }
}

</mosaic_0001>

<llo_original>
// kernel: tpu_custom_call.1
$region0: #{tpu_custom_call.1}
  #allocation0 [shape = 'u32[]', space=smem, size = 0x4, offset = 0x4, fixed_abs, tag = 'smem constant byte address 0x4 - core index']
  #allocation1 [shape = 'u32[144,128]{1,0:T(1,128)}', space=vmem, size = 0x12000, scoped, tag = 'internal scratch']
  %s0 = inlined_call_operand.hbm [shape: f32[9,640], index: 0, kind: input, shape index: {}]
  %s1 = inlined_call_operand.vmem [shape: f32[8,9], index: 1, kind: input, shape index: {}]
  %s2 = inlined_call_operand.vmem [shape: f32[8,1], index: 2, kind: input, shape index: {}]
  %s3 = inlined_call_operand.vmem [shape: f32[8,1], index: 3, kind: input, shape index: {}]
  %s4 = inlined_call_operand.vmem [shape: f32[8,72], index: 4, kind: input, shape index: {}]
  %s5 = inlined_call_operand.vmem [shape: f32[8,1], index: 5, kind: input, shape index: {}]
  %s6 = inlined_call_operand.vmem [shape: f32[8,1], index: 6, kind: input, shape index: {}]
  %s7 = inlined_call_operand.vmem [shape: f32[1,640], index: 7, kind: input, shape index: {}]
  %s8 = inlined_call_operand.vmem [shape: f32[1,512], index: 8, kind: input, shape index: {}]
  %s9 = inlined_call_operand.hbm [shape: f32[8,512], index: 9, kind: output, shape index: {}]
  %s10 = sld [smem:[#allocation0]]
  $region50: #{tpu_custom_call.1} parent=0
    _
  %s12 = ssub.s32 1, %s10
  %s13 = scalar_select 0, %s12, %s10
  $region1: #{tpu_custom_call.1} parent=0
    #allocation2 [shape = 'u8[40960]{0}', space=vmem, size = 0xa000, scoped, tag = 'input window, operand 0, single buffered']
    #allocation3 [shape = 's32[1]{0}', space=sflag, size = 0x4, scoped, tag = 'scoped memory for tpu_custom_call.1']
    #allocation4 [shape = 's32[1]{0}', space=sflag, size = 0x4, scoped, tag = 'scoped memory for tpu_custom_call.1']
    #allocation5 [shape = 'u8[16384]{0}', space=vmem, size = 0x4000, scoped, tag = 'output window, operand 0, single buffered']
    %14 = vsyncpa [#allocation3], 0
    %15 = vsyncpa [#allocation4], 0
    // Predicated region
    $region2: #{tpu_custom_call.1} parent=1 // pred_check
      _
    $region3: #{tpu_custom_call.1} parent=1 // pred_check_branch
      %17 = sbr.rel (0) target = $region5
    $region4: #{tpu_custom_call.1} parent=1 // pred_region
      %s19 = ssub.s32 1280, 1280
      %20 = vsyncadd [#allocation3], %s19
      %s21 = sshll.u32 [#allocation2], 4
      %s22 = int_to_ptr.vmem [resolvable:$true] %s21
      %27 = dma.hbm_to_vmem [thread:$0]  %s0, 1280, %s22, [#allocation3], 640, 640, 40
    $region5: #{tpu_custom_call.1} parent=1 // pred_fallthru
      _
    // Predicated region
    $region6: #{tpu_custom_call.1} parent=1 // pred_check
      _
    $region7: #{tpu_custom_call.1} parent=1 // pred_check_branch
      %29 = sbr.rel (0) target = $region9
    $region8: #{tpu_custom_call.1} parent=1 // pred_region
      _
    $region9: #{tpu_custom_call.1} parent=1 // pred_fallthru
      _
    // Predicated region
    $region10: #{tpu_custom_call.1} parent=1 // pred_check
      _
    $region11: #{tpu_custom_call.1} parent=1 // pred_check_branch
      %31 = sbr.rel (0) target = $region13
    $region12: #{tpu_custom_call.1} parent=1 // pred_region
      _
    $region13: #{tpu_custom_call.1} parent=1 // pred_fallthru
      _
    // Predicated region
    $region14: #{tpu_custom_call.1} parent=1 // pred_check
      _
    $region15: #{tpu_custom_call.1} parent=1 // pred_check_branch
      %33 = sbr.rel (0) target = $region17
    $region16: #{tpu_custom_call.1} parent=1 // pred_region
      _
    $region17: #{tpu_custom_call.1} parent=1 // pred_fallthru
      _
    // Predicated region
    $region18: #{tpu_custom_call.1} parent=1 // pred_check
      _
    $region19: #{tpu_custom_call.1} parent=1 // pred_check_branch
      %35 = sbr.rel (0) target = $region21
    $region20: #{tpu_custom_call.1} parent=1 // pred_region
      _
    $region21: #{tpu_custom_call.1} parent=1 // pred_fallthru
      _
    // Predicated region
    $region22: #{tpu_custom_call.1} parent=1 // pred_check
      _
    $region23: #{tpu_custom_call.1} parent=1 // pred_check_branch
      %37 = sbr.rel (0) target = $region25
    $region24: #{tpu_custom_call.1} parent=1 // pred_region
      _
    $region25: #{tpu_custom_call.1} parent=1 // pred_fallthru
      _
    // Predicated region
    $region26: #{tpu_custom_call.1} parent=1 // pred_check
      _
    $region27: #{tpu_custom_call.1} parent=1 // pred_check_branch
      %39 = sbr.rel (0) target = $region29
    $region28: #{tpu_custom_call.1} parent=1 // pred_region
      _
    $region29: #{tpu_custom_call.1} parent=1 // pred_fallthru
      _
    // Predicated region
    $region30: #{tpu_custom_call.1} parent=1 // pred_check
      _
    $region31: #{tpu_custom_call.1} parent=1 // pred_check_branch
      %41 = sbr.rel (0) target = $region33
    $region32: #{tpu_custom_call.1} parent=1 // pred_region
      _
    $region33: #{tpu_custom_call.1} parent=1 // pred_fallthru
      _
    // Predicated region
    $region34: #{tpu_custom_call.1} parent=1 // pred_check
      _
    $region35: #{tpu_custom_call.1} parent=1 // pred_check_branch
      %43 = sbr.rel (0) target = $region37
    $region36: #{tpu_custom_call.1} parent=1 // pred_region
      _
    $region37: #{tpu_custom_call.1} parent=1 // pred_fallthru
      _
    // Predicated region
    $region38: #{tpu_custom_call.1} parent=1 // pred_check
      _
    $region39: #{tpu_custom_call.1} parent=1 // pred_check_branch
      %45 = sbr.rel (0) target = $region41
    $region40: #{tpu_custom_call.1} parent=1 // pred_region
      %46 = dma.done [#allocation3], 1280
    $region41: #{tpu_custom_call.1} parent=1 // pred_fallthru
      _
    %v47 = vld [vmem:[%s1] sm:$0xff]
    %v48 = vld [vmem:[#allocation2] sm:$0xff]
    %v49 = vld [vmem:[#allocation2 + $0x8] sm:$0xff]
    %v50 = vld [vmem:[#allocation2 + $0x10] sm:$0xff]
    %v51 = vld [vmem:[#allocation2 + $0x18] sm:$0xff]
    %v52 = vld [vmem:[#allocation2 + $0x20] sm:$0xff]
    %v53 = vld [vmem:[#allocation2 + $0x28] sm:$0x1]
    %v54 = vld [vmem:[#allocation2 + $0x30] sm:$0x1]
    %v55 = vld [vmem:[#allocation2 + $0x38] sm:$0x1]
    %v56 = vld [vmem:[#allocation2 + $0x40] sm:$0x1]
    %v57 = vld [vmem:[#allocation2 + $0x48] sm:$0x1]
    %vm58 = vcmask 72704
    %v60 = vsel %vm58, %v47, 0
    %vm62 = vcmask 1040384
    %v64 = vsel %vm62, %v53, 0
    %v67 = vsel %vm62, %v54, 0
    %v70 = vsel %vm62, %v55, 0
    %v73 = vsel %vm62, %v56, 0
    %v76 = vsel %vm62, %v57, 0
    %78 = vmatprep.subr.mxu0 %v49
    %79 = vmatpush1.msra.mxu0 %v48
    %80 = vmatprep.subr.mxu0 %v67
    %81 = vmatpush1.msra.mxu0 %v64
    %82 = vmatprep.subr.mxu0 0.0
    %83 = vmatpush1.msra.mxu0 0.0
    %84 = vmatprep.subr.mxu0 0.0
    %85 = vmatpush1.msra.mxu0 0.0
    %86 = vmatprep.subr.mxu0 0.0
    %87 = vmatpush1.msra.mxu0 0.0
    %88 = vmatprep.subr.mxu0 0.0
    %89 = vmatpush1.msra.mxu0 0.0
    %90 = vmatprep.subr.mxu0 0.0
    %91 = vmatpush1.msra.mxu0 0.0
    %92 = vmatprep.subr.mxu0 0.0
    %93 = vmatpush1.msra.mxu0 0.0
    %94 = vmatprep.subr.mxu0 0.0
    %95 = vmatpush1.msra.mxu0 0.0
    %96 = vmatprep.subr.mxu0 0.0
    %97 = vmatpush1.msra.mxu0 0.0
    %98 = vmatprep.subr.mxu0 0.0
    %99 = vmatpush1.msra.mxu0 0.0
    %100 = vmatprep.subr.mxu0 0.0
    %101 = vmatpush1.msra.mxu0 0.0
    %102 = vmatprep.subr.mxu0 0.0
    %103 = vmatpush1.msra.mxu0 0.0
    %104 = vmatprep.subr.mxu0 0.0
    %105 = vmatpush1.msra.mxu0 0.0
    %106 = vmatprep.subr.mxu0 0.0
    %107 = vmatpush1.msra.mxu0 0.0
    %108 = vmatprep.subr.mxu0 0.0
    %109 = vmatpush1.msra.mxu0 0.0
    %110 = vmatprep.subr.mxu0 0.0
    %111 = vmatpush1.msra.mxu0 0.0
    %112 = vmatprep.subr.mxu0 0.0
    %113 = vmatpush1.msra.mxu0 0.0
    %114 = vmatprep.subr.mxu0 0.0
    %115 = vmatpush1.msra.mxu0 0.0
    %116 = vmatprep.subr.mxu0 0.0
    %117 = vmatpush1.msra.mxu0 0.0
    %118 = vmatprep.subr.mxu0 0.0
    %119 = vmatpush1.msra.mxu0 0.0
    %120 = vmatprep.subr.mxu0 0.0
    %121 = vmatpush1.msra.mxu0 0.0
    %122 = vmatprep.subr.mxu0 0.0
    %123 = vmatpush1.msra.mxu0 0.0
    %124 = vmatprep.subr.mxu0 0.0
    %125 = vmatpush1.msra.mxu0 0.0
    %126 = vmatprep.subr.mxu0 0.0
    %127 = vmatpush1.msra.mxu0 0.0
    %128 = vmatprep.subr.mxu0 0.0
    %129 = vmatpush1.msra.mxu0 0.0
    %130 = vmatprep.subr.mxu0 0.0
    %131 = vmatpush1.msra.mxu0 0.0
    %132 = vmatprep.subr.mxu0 0.0
    %133 = vmatpush1.msra.mxu0 0.0
    %134 = vmatprep.subr.mxu0 0.0
    %135 = vmatpush1.msra.mxu0 0.0
    %136 = vmatprep.subr.mxu0 0.0
    %137 = vmatpush1.msra.mxu0 0.0
    %138 = vmatprep.subr.mxu0 0.0
    %139 = vmatpush1.msra.mxu0 0.0
    %140 = vmatprep.subr.mxu0 0.0
    %141 = vmatpush1.msra.mxu0 0.0
    %142 = vmatprep.mubr.f32.mxu0 0.0
    %143 = vmatmul.mubr.f32.gmra.mrb[0].mxu0 %v60
    %v144 = vpop.f32.mrb[0].mxu0
    %v145 = vadd.f32 0.0, %v144
    %v146 = vpop.f32.mrb[0].mxu0
    %v147 = vadd.f32 0.0, %v146
    %148 = vdwg.mxu0
    %149 = vmatprep.subr.mxu0 %v51
    %150 = vmatpush1.msra.mxu0 %v50
    %151 = vmatprep.subr.mxu0 %v73
    %152 = vmatpush1.msra.mxu0 %v70
    %153 = vmatprep.subr.mxu0 0.0
    %154 = vmatpush1.msra.mxu0 0.0
    %155 = vmatprep.subr.mxu0 0.0
    %156 = vmatpush1.msra.mxu0 0.0
    %157 = vmatprep.subr.mxu0 0.0
    %158 = vmatpush1.msra.mxu0 0.0
    %159 = vmatprep.subr.mxu0 0.0
    %160 = vmatpush1.msra.mxu0 0.0
    %161 = vmatprep.subr.mxu0 0.0
    %162 = vmatpush1.msra.mxu0 0.0
    %163 = vmatprep.subr.mxu0 0.0
    %164 = vmatpush1.msra.mxu0 0.0
    %165 = vmatprep.subr.mxu0 0.0
    %166 = vmatpush1.msra.mxu0 0.0
    %167 = vmatprep.subr.mxu0 0.0
    %168 = vmatpush1.msra.mxu0 0.0
    %169 = vmatprep.subr.mxu0 0.0
    %170 = vmatpush1.msra.mxu0 0.0
    %171 = vmatprep.subr.mxu0 0.0
    %172 = vmatpush1.msra.mxu0 0.0
    %173 = vmatprep.subr.mxu0 0.0
    %174 = vmatpush1.msra.mxu0 0.0
    %175 = vmatprep.subr.mxu0 0.0
    %176 = vmatpush1.msra.mxu0 0.0
    %177 = vmatprep.subr.mxu0 0.0
    %178 = vmatpush1.msra.mxu0 0.0
    %179 = vmatprep.subr.mxu0 0.0
    %180 = vmatpush1.msra.mxu0 0.0
    %181 = vmatprep.subr.mxu0 0.0
    %182 = vmatpush1.msra.mxu0 0.0
    %183 = vmatprep.subr.mxu0 0.0
    %184 = vmatpush1.msra.mxu0 0.0
    %185 = vmatprep.subr.mxu0 0.0
    %186 = vmatpush1.msra.mxu0 0.0
    %187 = vmatprep.subr.mxu0 0.0
    %188 = vmatpush1.msra.mxu0 0.0
    %189 = vmatprep.subr.mxu0 0.0
    %190 = vmatpush1.msra.mxu0 0.0
    %191 = vmatprep.subr.mxu0 0.0
    %192 = vmatpush1.msra.mxu0 0.0
    %193 = vmatprep.subr.mxu0 0.0
    %194 = vmatpush1.msra.mxu0 0.0
    %195 = vmatprep.subr.mxu0 0.0
    %196 = vmatpush1.msra.mxu0 0.0
    %197 = vmatprep.subr.mxu0 0.0
    %198 = vmatpush1.msra.mxu0 0.0
    %199 = vmatprep.subr.mxu0 0.0
    %200 = vmatpush1.msra.mxu0 0.0
    %201 = vmatprep.subr.mxu0 0.0
    %202 = vmatpush1.msra.mxu0 0.0
    %203 = vmatprep.subr.mxu0 0.0
    %204 = vmatpush1.msra.mxu0 0.0
    %205 = vmatprep.subr.mxu0 0.0
    %206 = vmatpush1.msra.mxu0 0.0
    %207 = vmatprep.subr.mxu0 0.0
    %208 = vmatpush1.msra.mxu0 0.0
    %209 = vmatprep.subr.mxu0 0.0
    %210 = vmatpush1.msra.mxu0 0.0
    %211 = vmatprep.subr.mxu0 0.0
    %212 = vmatpush1.msra.mxu0 0.0
    %213 = vmatprep.mubr.f32.mxu0 0.0
    %214 = vmatmul.mubr.f32.gmra.mrb[0].mxu0 %v60
    %v215 = vpop.f32.mrb[0].mxu0
    %v216 = vadd.f32 0.0, %v215
    %v217 = vpop.f32.mrb[0].mxu0
    %v218 = vadd.f32 0.0, %v217
    %219 = vdwg.mxu0
    %220 = vmatprep.subr.mxu0 0.0
    %221 = vmatpush1.msra.mxu0 %v52
    %222 = vmatprep.subr.mxu0 0.0
    %223 = vmatpush1.msra.mxu0 %v76
    %224 = vmatprep.subr.mxu0 0.0
    %225 = vmatpush1.msra.mxu0 0.0
    %226 = vmatprep.subr.mxu0 0.0
    %227 = vmatpush1.msra.mxu0 0.0
    %228 = vmatprep.subr.mxu0 0.0
    %229 = vmatpush1.msra.mxu0 0.0
    %230 = vmatprep.subr.mxu0 0.0
    %231 = vmatpush1.msra.mxu0 0.0
    %232 = vmatprep.subr.mxu0 0.0
    %233 = vmatpush1.msra.mxu0 0.0
    %234 = vmatprep.subr.mxu0 0.0
    %235 = vmatpush1.msra.mxu0 0.0
    %236 = vmatprep.subr.mxu0 0.0
    %237 = vmatpush1.msra.mxu0 0.0
    %238 = vmatprep.subr.mxu0 0.0
    %239 = vmatpush1.msra.mxu0 0.0
    %240 = vmatprep.subr.mxu0 0.0
    %241 = vmatpush1.msra.mxu0 0.0
    %242 = vmatprep.subr.mxu0 0.0
    %243 = vmatpush1.msra.mxu0 0.0
    %244 = vmatprep.subr.mxu0 0.0
    %245 = vmatpush1.msra.mxu0 0.0
    %246 = vmatprep.subr.mxu0 0.0
    %247 = vmatpush1.msra.mxu0 0.0
    %248 = vmatprep.subr.mxu0 0.0
    %249 = vmatpush1.msra.mxu0 0.0
    %250 = vmatprep.subr.mxu0 0.0
    %251 = vmatpush1.msra.mxu0 0.0
    %252 = vmatprep.subr.mxu0 0.0
    %253 = vmatpush1.msra.mxu0 0.0
    %254 = vmatprep.subr.mxu0 0.0
    %255 = vmatpush1.msra.mxu0 0.0
    %256 = vmatprep.subr.mxu0 0.0
    %257 = vmatpush1.msra.mxu0 0.0
    %258 = vmatprep.subr.mxu0 0.0
    %259 = vmatpush1.msra.mxu0 0.0
    %260 = vmatprep.subr.mxu0 0.0
    %261 = vmatpush1.msra.mxu0 0.0
    %262 = vmatprep.subr.mxu0 0.0
    %263 = vmatpush1.msra.mxu0 0.0
    %264 = vmatprep.subr.mxu0 0.0
    %265 = vmatpush1.msra.mxu0 0.0
    %266 = vmatprep.subr.mxu0 0.0
    %267 = vmatpush1.msra.mxu0 0.0
    %268 = vmatprep.subr.mxu0 0.0
    %269 = vmatpush1.msra.mxu0 0.0
    %270 = vmatprep.subr.mxu0 0.0
    %271 = vmatpush1.msra.mxu0 0.0
    %272 = vmatprep.subr.mxu0 0.0
    %273 = vmatpush1.msra.mxu0 0.0
    %274 = vmatprep.subr.mxu0 0.0
    %275 = vmatpush1.msra.mxu0 0.0
    %276 = vmatprep.subr.mxu0 0.0
    %277 = vmatpush1.msra.mxu0 0.0
    %278 = vmatprep.subr.mxu0 0.0
    %279 = vmatpush1.msra.mxu0 0.0
    %280 = vmatprep.subr.mxu0 0.0
    %281 = vmatpush1.msra.mxu0 0.0
    %282 = vmatprep.subr.mxu0 0.0
    %283 = vmatpush1.msra.mxu0 0.0
    %284 = vmatprep.mubr.f32.mxu0 0.0
    %285 = vmatmul.mubr.f32.gmra.mrb[0].mxu0 %v60
    %v286 = vpop.f32.mrb[0].mxu0
    %v287 = vadd.f32 0.0, %v286
    %v288 = vpop.f32.mrb[0].mxu0
    %289 = vdwg.mxu0
    %v290 = vld [vmem:[%s7] sm:$0x1f]
    %v292 = vlaneseq
    %v293 = vshrl.u32 %v292, 7
    %v294 = vsub.s32 0, %v293
    %v295 = vrot.slane %v290, %v294
    %v296 = vlaneseq
    %v297 = vshrl.u32 %v296, 7
    %v298 = vsub.s32 1, %v297
    %v299 = vrot.slane %v290, %v298
    %v300 = vlaneseq
    %v301 = vshrl.u32 %v300, 7
    %v302 = vsub.s32 2, %v301
    %v303 = vrot.slane %v290, %v302
    %v304 = vlaneseq
    %v305 = vshrl.u32 %v304, 7
    %v306 = vsub.s32 3, %v305
    %v307 = vrot.slane %v290, %v306
    %v308 = vlaneseq
    %v309 = vshrl.u32 %v308, 7
    %v310 = vsub.s32 4, %v309
    %v311 = vrot.slane %v290, %v310
    %v317 = vmul.f32 %v145, %v295
    %v318 = vmul.f32 %v147, %v299
    %v319 = vmul.f32 %v216, %v303
    %v320 = vmul.f32 %v218, %v307
    %v321 = vmul.f32 %v287, %v311
    %v322 = vadd.f32 %v317, %v318
    %v323 = vadd.f32 %v322, %v319
    %v324 = vadd.f32 %v323, %v320
    %v325 = vadd.f32 %v324, %v321
    %326 = vadd.xlane.f32.xlu0 %v325
    %v327 = vpop.xlane.xlu0 %326
    %v328 = vmul.f32 %v327, 0.0025510204
    %v329 = vsub.f32 %v145, %v328
    %v330 = vsub.f32 %v147, %v328
    %v331 = vsub.f32 %v216, %v328
    %v332 = vsub.f32 %v218, %v328
    %v333 = vsub.f32 %v287, %v328
    %v334 = vmul.f32 %v329, %v295
    %v335 = vmul.f32 %v330, %v299
    %v336 = vmul.f32 %v331, %v303
    %v337 = vmul.f32 %v332, %v307
    %v338 = vmul.f32 %v333, %v311
    %v339 = vmul.f32 %v334, %v334
    %v340 = vmul.f32 %v335, %v335
    %v341 = vmul.f32 %v336, %v336
    %v342 = vmul.f32 %v337, %v337
    %v343 = vmul.f32 %v338, %v338
    %v344 = vadd.f32 %v339, %v340
    %v345 = vadd.f32 %v344, %v341
    %v346 = vadd.f32 %v345, %v342
    %v347 = vadd.f32 %v346, %v343
    %348 = vadd.xlane.f32.xlu0 %v347
    %v349 = vpop.xlane.xlu0 %348
    %v350 = vmul.f32 %v349, 0.0025510204
    %v351 = vld [vmem:[%s2] sm:$0xff]
    %v352 = vadd.f32 %v350, 1e-05
    %v353 = vrsqrt.pop %v352
    %v354 = vmul.f32 %v351, %v353
    %v355 = vld [vmem:[%s3] sm:$0xff]
    %v356 = vmul.f32 %v328, %v354
    %v357 = vsub.f32 %v355, %v356
    %359 = vset.pattern.permute.xlu0 0
    %360 = vperm.xlu0 %359, %v354
    %v361 = vpop.permute.xlu0 %360
    %v363 = vmul.f32 %v145, %v361
    %v364 = vmul.f32 %v147, %v361
    %v365 = vmul.f32 %v216, %v361
    %v366 = vmul.f32 %v218, %v361
    %v367 = vmul.f32 %v287, %v361
    %369 = vset.pattern.permute.xlu0 0
    %370 = vperm.xlu0 %369, %v357
    %v371 = vpop.permute.xlu0 %370
    %v373 = vadd.f32 %v363, %v371
    %v374 = vadd.f32 %v364, %v371
    %v375 = vadd.f32 %v365, %v371
    %v376 = vadd.f32 %v366, %v371
    %v377 = vadd.f32 %v367, %v371
    %v378 = vmax.f32 %v373, 0.0
    %v379 = vmax.f32 %v374, 0.0
    %v380 = vmax.f32 %v375, 0.0
    %v381 = vmax.f32 %v376, 0.0
    %v382 = vmax.f32 %v377, 0.0
    %388 = vrot.lane.b32.xlu0 %v378, 127
    %v389 = vpop.permute.xlu0 %388
    %390 = vrot.lane.b32.xlu0 %v379, 127
    %v391 = vpop.permute.xlu0 %390
    %392 = vrot.lane.b32.xlu0 %v380, 127
    %v393 = vpop.permute.xlu0 %392
    %394 = vrot.lane.b32.xlu0 %v381, 127
    %v395 = vpop.permute.xlu0 %394
    %396 = vrot.lane.b32.xlu0 %v382, 127
    %v397 = vpop.permute.xlu0 %396
    %vm398 = vcmask 1039360
    %v399 = vsel %vm398, %v389, %v391
    %v400 = vsel %vm398, %v391, %v393
    %v401 = vsel %vm398, %v393, %v395
    %v402 = vsel %vm398, %v395, %v397
    %407 = vrot.lane.b32.xlu0 %v378, 126
    %v408 = vpop.permute.xlu0 %407
    %409 = vrot.lane.b32.xlu0 %v379, 126
    %v410 = vpop.permute.xlu0 %409
    %411 = vrot.lane.b32.xlu0 %v380, 126
    %v412 = vpop.permute.xlu0 %411
    %413 = vrot.lane.b32.xlu0 %v381, 126
    %v414 = vpop.permute.xlu0 %413
    %415 = vrot.lane.b32.xlu0 %v382, 126
    %v416 = vpop.permute.xlu0 %415
    %vm417 = vcmask 1031168
    %v418 = vsel %vm417, %v408, %v410
    %v419 = vsel %vm417, %v410, %v412
    %v420 = vsel %vm417, %v412, %v414
    %v421 = vsel %vm417, %v414, %v416
    %426 = vrot.lane.b32.xlu0 %v378, 114
    %v427 = vpop.permute.xlu0 %426
    %428 = vrot.lane.b32.xlu0 %v379, 114
    %v429 = vpop.permute.xlu0 %428
    %430 = vrot.lane.b32.xlu0 %v380, 114
    %v431 = vpop.permute.xlu0 %430
    %432 = vrot.lane.b32.xlu0 %v381, 114
    %v433 = vpop.permute.xlu0 %432
    %434 = vrot.lane.b32.xlu0 %v382, 114
    %v435 = vpop.permute.xlu0 %434
    %vm436 = vcmask 932864
    %v437 = vsel %vm436, %v427, %v429
    %v438 = vsel %vm436, %v429, %v431
    %v439 = vsel %vm436, %v431, %v433
    %v440 = vsel %vm436, %v433, %v435
    %445 = vrot.lane.b32.xlu0 %v378, 113
    %v446 = vpop.permute.xlu0 %445
    %447 = vrot.lane.b32.xlu0 %v379, 113
    %v448 = vpop.permute.xlu0 %447
    %449 = vrot.lane.b32.xlu0 %v380, 113
    %v450 = vpop.permute.xlu0 %449
    %451 = vrot.lane.b32.xlu0 %v381, 113
    %v452 = vpop.permute.xlu0 %451
    %453 = vrot.lane.b32.xlu0 %v382, 113
    %v454 = vpop.permute.xlu0 %453
    %vm455 = vcmask 924672
    %v456 = vsel %vm455, %v446, %v448
    %v457 = vsel %vm455, %v448, %v450
    %v458 = vsel %vm455, %v450, %v452
    %v459 = vsel %vm455, %v452, %v454
    %464 = vrot.lane.b32.xlu0 %v378, 112
    %v465 = vpop.permute.xlu0 %464
    %466 = vrot.lane.b32.xlu0 %v379, 112
    %v467 = vpop.permute.xlu0 %466
    %468 = vrot.lane.b32.xlu0 %v380, 112
    %v469 = vpop.permute.xlu0 %468
    %470 = vrot.lane.b32.xlu0 %v381, 112
    %v471 = vpop.permute.xlu0 %470
    %472 = vrot.lane.b32.xlu0 %v382, 112
    %v473 = vpop.permute.xlu0 %472
    %vm474 = vcmask 916480
    %v475 = vsel %vm474, %v465, %v467
    %v476 = vsel %vm474, %v467, %v469
    %v477 = vsel %vm474, %v469, %v471
    %v478 = vsel %vm474, %v471, %v473
    %483 = vrot.lane.b32.xlu0 %v378, 100
    %v484 = vpop.permute.xlu0 %483
    %485 = vrot.lane.b32.xlu0 %v379, 100
    %v486 = vpop.permute.xlu0 %485
    %487 = vrot.lane.b32.xlu0 %v380, 100
    %v488 = vpop.permute.xlu0 %487
    %489 = vrot.lane.b32.xlu0 %v381, 100
    %v490 = vpop.permute.xlu0 %489
    %491 = vrot.lane.b32.xlu0 %v382, 100
    %v492 = vpop.permute.xlu0 %491
    %vm493 = vcmask 818176
    %v494 = vsel %vm493, %v484, %v486
    %v495 = vsel %vm493, %v486, %v488
    %v496 = vsel %vm493, %v488, %v490
    %v497 = vsel %vm493, %v490, %v492
    %502 = vrot.lane.b32.xlu0 %v378, 99
    %v503 = vpop.permute.xlu0 %502
    %504 = vrot.lane.b32.xlu0 %v379, 99
    %v505 = vpop.permute.xlu0 %504
    %506 = vrot.lane.b32.xlu0 %v380, 99
    %v507 = vpop.permute.xlu0 %506
    %508 = vrot.lane.b32.xlu0 %v381, 99
    %v509 = vpop.permute.xlu0 %508
    %510 = vrot.lane.b32.xlu0 %v382, 99
    %v511 = vpop.permute.xlu0 %510
    %vm512 = vcmask 809984
    %v513 = vsel %vm512, %v503, %v505
    %v514 = vsel %vm512, %v505, %v507
    %v515 = vsel %vm512, %v507, %v509
    %v516 = vsel %vm512, %v509, %v511
    %521 = vrot.lane.b32.xlu0 %v378, 98
    %v522 = vpop.permute.xlu0 %521
    %523 = vrot.lane.b32.xlu0 %v379, 98
    %v524 = vpop.permute.xlu0 %523
    %525 = vrot.lane.b32.xlu0 %v380, 98
    %v526 = vpop.permute.xlu0 %525
    %527 = vrot.lane.b32.xlu0 %v381, 98
    %v528 = vpop.permute.xlu0 %527
    %529 = vrot.lane.b32.xlu0 %v382, 98
    %v530 = vpop.permute.xlu0 %529
    %vm531 = vcmask 801792
    %v532 = vsel %vm531, %v522, %v524
    %v533 = vsel %vm531, %v524, %v526
    %v534 = vsel %vm531, %v526, %v528
    %v535 = vsel %vm531, %v528, %v530
    %v540 = vld [vmem:[%s4] sm:$0xff]
    %vm541 = vcmask 588800
    %v543 = vsel %vm541, %v540, 0
    %545 = vmatprep.subr.mxu0 %v379
    %546 = vmatpush1.msra.mxu0 %v378
    %547 = vmatprep.subr.mxu0 %v400
    %548 = vmatpush1.msra.mxu0 %v399
    %549 = vmatprep.subr.mxu0 %v419
    %550 = vmatpush1.msra.mxu0 %v418
    %551 = vmatprep.subr.mxu0 %v438
    %552 = vmatpush1.msra.mxu0 %v437
    %553 = vmatprep.subr.mxu0 %v457
    %554 = vmatpush1.msra.mxu0 %v456
    %555 = vmatprep.subr.mxu0 %v476
    %556 = vmatpush1.msra.mxu0 %v475
    %557 = vmatprep.subr.mxu0 %v495
    %558 = vmatpush1.msra.mxu0 %v494
    %559 = vmatprep.subr.mxu0 %v514
    %560 = vmatpush1.msra.mxu0 %v513
    %561 = vmatprep.subr.mxu0 %v533
    %562 = vmatpush1.msra.mxu0 %v532
    %563 = vmatprep.subr.mxu0 0.0
    %564 = vmatpush1.msra.mxu0 0.0
    %565 = vmatprep.subr.mxu0 0.0
    %566 = vmatpush1.msra.mxu0 0.0
    %567 = vmatprep.subr.mxu0 0.0
    %568 = vmatpush1.msra.mxu0 0.0
    %569 = vmatprep.subr.mxu0 0.0
    %570 = vmatpush1.msra.mxu0 0.0
    %571 = vmatprep.subr.mxu0 0.0
    %572 = vmatpush1.msra.mxu0 0.0
    %573 = vmatprep.subr.mxu0 0.0
    %574 = vmatpush1.msra.mxu0 0.0
    %575 = vmatprep.subr.mxu0 0.0
    %576 = vmatpush1.msra.mxu0 0.0
    %577 = vmatprep.subr.mxu0 0.0
    %578 = vmatpush1.msra.mxu0 0.0
    %579 = vmatprep.subr.mxu0 0.0
    %580 = vmatpush1.msra.mxu0 0.0
    %581 = vmatprep.subr.mxu0 0.0
    %582 = vmatpush1.msra.mxu0 0.0
    %583 = vmatprep.subr.mxu0 0.0
    %584 = vmatpush1.msra.mxu0 0.0
    %585 = vmatprep.subr.mxu0 0.0
    %586 = vmatpush1.msra.mxu0 0.0
    %587 = vmatprep.subr.mxu0 0.0
    %588 = vmatpush1.msra.mxu0 0.0
    %589 = vmatprep.subr.mxu0 0.0
    %590 = vmatpush1.msra.mxu0 0.0
    %591 = vmatprep.subr.mxu0 0.0
    %592 = vmatpush1.msra.mxu0 0.0
    %593 = vmatprep.subr.mxu0 0.0
    %594 = vmatpush1.msra.mxu0 0.0
    %595 = vmatprep.subr.mxu0 0.0
    %596 = vmatpush1.msra.mxu0 0.0
    %597 = vmatprep.subr.mxu0 0.0
    %598 = vmatpush1.msra.mxu0 0.0
    %599 = vmatprep.subr.mxu0 0.0
    %600 = vmatpush1.msra.mxu0 0.0
    %601 = vmatprep.subr.mxu0 0.0
    %602 = vmatpush1.msra.mxu0 0.0
    %603 = vmatprep.subr.mxu0 0.0
    %604 = vmatpush1.msra.mxu0 0.0
    %605 = vmatprep.subr.mxu0 0.0
    %606 = vmatpush1.msra.mxu0 0.0
    %607 = vmatprep.subr.mxu0 0.0
    %608 = vmatpush1.msra.mxu0 0.0
    %609 = vmatprep.mubr.f32.mxu0 0.0
    %610 = vmatmul.mubr.f32.gmra.mrb[0].mxu0 %v543
    %v611 = vpop.f32.mrb[0].mxu0
    %v612 = vadd.f32 0.0, %v611
    %v613 = vpop.f32.mrb[0].mxu0
    %v614 = vadd.f32 0.0, %v613
    %615 = vdwg.mxu0
    %616 = vmatprep.subr.mxu0 %v381
    %617 = vmatpush1.msra.mxu0 %v380
    %618 = vmatprep.subr.mxu0 %v402
    %619 = vmatpush1.msra.mxu0 %v401
    %620 = vmatprep.subr.mxu0 %v421
    %621 = vmatpush1.msra.mxu0 %v420
    %622 = vmatprep.subr.mxu0 %v440
    %623 = vmatpush1.msra.mxu0 %v439
    %624 = vmatprep.subr.mxu0 %v459
    %625 = vmatpush1.msra.mxu0 %v458
    %626 = vmatprep.subr.mxu0 %v478
    %627 = vmatpush1.msra.mxu0 %v477
    %628 = vmatprep.subr.mxu0 %v497
    %629 = vmatpush1.msra.mxu0 %v496
    %630 = vmatprep.subr.mxu0 %v516
    %631 = vmatpush1.msra.mxu0 %v515
    %632 = vmatprep.subr.mxu0 %v535
    %633 = vmatpush1.msra.mxu0 %v534
    %634 = vmatprep.subr.mxu0 0.0
    %635 = vmatpush1.msra.mxu0 0.0
    %636 = vmatprep.subr.mxu0 0.0
    %637 = vmatpush1.msra.mxu0 0.0
    %638 = vmatprep.subr.mxu0 0.0
    %639 = vmatpush1.msra.mxu0 0.0
    %640 = vmatprep.subr.mxu0 0.0
    %641 = vmatpush1.msra.mxu0 0.0
    %642 = vmatprep.subr.mxu0 0.0
    %643 = vmatpush1.msra.mxu0 0.0
    %644 = vmatprep.subr.mxu0 0.0
    %645 = vmatpush1.msra.mxu0 0.0
    %646 = vmatprep.subr.mxu0 0.0
    %647 = vmatpush1.msra.mxu0 0.0
    %648 = vmatprep.subr.mxu0 0.0
    %649 = vmatpush1.msra.mxu0 0.0
    %650 = vmatprep.subr.mxu0 0.0
    %651 = vmatpush1.msra.mxu0 0.0
    %652 = vmatprep.subr.mxu0 0.0
    %653 = vmatpush1.msra.mxu0 0.0
    %654 = vmatprep.subr.mxu0 0.0
    %655 = vmatpush1.msra.mxu0 0.0
    %656 = vmatprep.subr.mxu0 0.0
    %657 = vmatpush1.msra.mxu0 0.0
    %658 = vmatprep.subr.mxu0 0.0
    %659 = vmatpush1.msra.mxu0 0.0
    %660 = vmatprep.subr.mxu0 0.0
    %661 = vmatpush1.msra.mxu0 0.0
    %662 = vmatprep.subr.mxu0 0.0
    %663 = vmatpush1.msra.mxu0 0.0
    %664 = vmatprep.subr.mxu0 0.0
    %665 = vmatpush1.msra.mxu0 0.0
    %666 = vmatprep.subr.mxu0 0.0
    %667 = vmatpush1.msra.mxu0 0.0
    %668 = vmatprep.subr.mxu0 0.0
    %669 = vmatpush1.msra.mxu0 0.0
    %670 = vmatprep.subr.mxu0 0.0
    %671 = vmatpush1.msra.mxu0 0.0
    %672 = vmatprep.subr.mxu0 0.0
    %673 = vmatpush1.msra.mxu0 0.0
    %674 = vmatprep.subr.mxu0 0.0
    %675 = vmatpush1.msra.mxu0 0.0
    %676 = vmatprep.subr.mxu0 0.0
    %677 = vmatpush1.msra.mxu0 0.0
    %678 = vmatprep.subr.mxu0 0.0
    %679 = vmatpush1.msra.mxu0 0.0
    %680 = vmatprep.mubr.f32.mxu0 0.0
    %681 = vmatmul.mubr.f32.gmra.mrb[0].mxu0 %v543
    %v682 = vpop.f32.mrb[0].mxu0
    %v683 = vadd.f32 0.0, %v682
    %v684 = vpop.f32.mrb[0].mxu0
    %v685 = vadd.f32 0.0, %v684
    %686 = vdwg.mxu0
    %v687 = vld [vmem:[%s8] sm:$0xf]
    %v689 = vlaneseq
    %v690 = vshrl.u32 %v689, 7
    %v691 = vsub.s32 0, %v690
    %v692 = vrot.slane %v687, %v691
    %v693 = vlaneseq
    %v694 = vshrl.u32 %v693, 7
    %v695 = vsub.s32 1, %v694
    %v696 = vrot.slane %v687, %v695
    %v697 = vlaneseq
    %v698 = vshrl.u32 %v697, 7
    %v699 = vsub.s32 2, %v698
    %v700 = vrot.slane %v687, %v699
    %v701 = vlaneseq
    %v702 = vshrl.u32 %v701, 7
    %v703 = vsub.s32 3, %v702
    %v704 = vrot.slane %v687, %v703
    %v709 = vmul.f32 %v612, %v692
    %v710 = vmul.f32 %v614, %v696
    %v711 = vmul.f32 %v683, %v700
    %v712 = vmul.f32 %v685, %v704
    %v713 = vadd.f32 %v709, %v710
    %v714 = vadd.f32 %v713, %v711
    %v715 = vadd.f32 %v714, %v712
    %716 = vadd.xlane.f32.xlu0 %v715
    %v717 = vpop.xlane.xlu0 %716
    %v718 = vmul.f32 %v717, 0.0034722222
    %v719 = vsub.f32 %v612, %v718
    %v720 = vsub.f32 %v614, %v718
    %v721 = vsub.f32 %v683, %v718
    %v722 = vsub.f32 %v685, %v718
    %v723 = vmul.f32 %v719, %v692
    %v724 = vmul.f32 %v720, %v696
    %v725 = vmul.f32 %v721, %v700
    %v726 = vmul.f32 %v722, %v704
    %v727 = vmul.f32 %v723, %v723
    %v728 = vmul.f32 %v724, %v724
    %v729 = vmul.f32 %v725, %v725
    %v730 = vmul.f32 %v726, %v726
    %v731 = vadd.f32 %v727, %v728
    %v732 = vadd.f32 %v731, %v729
    %v733 = vadd.f32 %v732, %v730
    %734 = vadd.xlane.f32.xlu0 %v733
    %v735 = vpop.xlane.xlu0 %734
    %v736 = vmul.f32 %v735, 0.0034722222
    %v737 = vld [vmem:[%s5] sm:$0xff]
    %v738 = vadd.f32 %v736, 1e-05
    %v739 = vrsqrt.pop %v738
    %v740 = vmul.f32 %v737, %v739
    %v741 = vld [vmem:[%s6] sm:$0xff]
    %v742 = vmul.f32 %v718, %v740
    %v743 = vsub.f32 %v741, %v742
    %745 = vset.pattern.permute.xlu0 0
    %746 = vperm.xlu0 %745, %v740
    %v747 = vpop.permute.xlu0 %746
    %v749 = vmul.f32 %v612, %v747
    %v750 = vmul.f32 %v614, %v747
    %v751 = vmul.f32 %v683, %v747
    %v752 = vmul.f32 %v685, %v747
    %754 = vset.pattern.permute.xlu0 0
    %755 = vperm.xlu0 %754, %v743
    %v756 = vpop.permute.xlu0 %755
    %v758 = vadd.f32 %v749, %v756
    %v759 = vadd.f32 %v750, %v756
    %v760 = vadd.f32 %v751, %v756
    %v761 = vadd.f32 %v752, %v756
    %v762 = vmax.f32 %v758, 0.0
    %v763 = vmax.f32 %v759, 0.0
    %v764 = vmax.f32 %v760, 0.0
    %v765 = vmax.f32 %v761, 0.0
    %766 = vst [vmem:[#allocation5] sm:$0xff] %v762
    %767 = vst [vmem:[#allocation5 + $0x8] sm:$0xff] %v763
    %768 = vst [vmem:[#allocation5 + $0x10] sm:$0xff] %v764
    %769 = vst [vmem:[#allocation5 + $0x18] sm:$0xff] %v765
    // Predicated region
    $region42: #{tpu_custom_call.1} parent=1 // pred_check
      _
    $region43: #{tpu_custom_call.1} parent=1 // pred_check_branch
      %771 = sbr.rel (0) target = $region45
    $region44: #{tpu_custom_call.1} parent=1 // pred_region
      %s773 = ssub.s32 512, 512
      %774 = vsyncadd [#allocation4], %s773
      %s776 = sshll.u32 [#allocation5], 4
      %s777 = int_to_ptr.vmem [resolvable:$true] %s776
      %779 = dma.vmem_to_hbm [thread:$0]  %s777, 512, %s9, [#allocation4]
    $region45: #{tpu_custom_call.1} parent=1 // pred_fallthru
      _
    // Predicated region
    $region46: #{tpu_custom_call.1} parent=1 // pred_check
      _
    $region47: #{tpu_custom_call.1} parent=1 // pred_check_branch
      %781 = sbr.rel (0) target = $region49
    $region48: #{tpu_custom_call.1} parent=1 // pred_region
      %782 = dma.done [#allocation4], 512
    $region49: #{tpu_custom_call.1} parent=1 // pred_fallthru
      _
    %783 = vsyncpa [#allocation3], 1
    %784 = vsyncpa [#allocation4], 1

</llo_original>
